<compile_context>
chip_gen: v5e
topology: v5e:2x2
jax: 0.10.0
libtpu: 0.0.40
codegen_flags: <defaults>
</compile_context>

<pallas_src>
import math
import functools

import jax
import jax.numpy as jnp
from jax.experimental import pallas as pl
from jax.experimental.pallas import tpu as pltpu


def causal_attn_kernel(x_ref, wqkv_ref, wo_ref, bqkv_ref, bo_ref, o_ref,
                       *, n_head, head_dim):
    L = x_ref.shape[1]
    C = n_head * head_dim

    # bf16 MXU operand, f32 accumulation.
    x = x_ref[0].astype(jnp.bfloat16)                      # (L, C)

    # Fused QKV projection: one wide matmul (N = 3C) instead of three narrow ones.
    qkv = jnp.dot(x, wqkv_ref[...],
                  preferred_element_type=jnp.float32) + bqkv_ref[...]   # (L, 3C) f32

    scale = 1.0 / math.sqrt(head_dim)
    q = qkv[:, 0 * C:1 * C] * scale                        # scale folded into q once
    k = qkv[:, 1 * C:2 * C]
    v = qkv[:, 2 * C:3 * C]

    # (L, C) -> (H, L, D): heads become a batched-matmul dim (no per-head slices).
    qh = jnp.transpose(q.reshape(L, n_head, head_dim), (1, 0, 2)).astype(jnp.bfloat16)
    kh = jnp.transpose(k.reshape(L, n_head, head_dim), (1, 0, 2)).astype(jnp.bfloat16)
    vh = jnp.transpose(v.reshape(L, n_head, head_dim), (1, 0, 2)).astype(jnp.bfloat16)

    # Batched QK^T: contract the last dims directly (no kh.T materialized).
    scores = jnp.einsum('hqd,hkd->hqk', qh, kh,
                        preferred_element_type=jnp.float32)             # (H, L, L) f32

    # Causal mask via >=2-D broadcasted iota (TPU requirement). Diagonal is always
    # unmasked, so -inf is safe (no fully-masked rows -> no NaN).
    row = jax.lax.broadcasted_iota(jnp.int32, (n_head, L, L), 1)
    col = jax.lax.broadcasted_iota(jnp.int32, (n_head, L, L), 2)
    scores = jnp.where(row >= col, scores, -jnp.inf)

    # Numerically-stable softmax in f32; normalization via EUP approx reciprocal.
    m = jnp.max(scores, axis=-1, keepdims=True)
    p = jnp.exp(scores - m)
    denom = jnp.sum(p, axis=-1, keepdims=True)
    probs = p * pl.reciprocal(denom, approx=True)
    # attn_dropout: p = 0.0 (eval) -> identity

    # Batched PV, bf16 operands, f32 accumulation.
    ctx = jnp.einsum('hqk,hkd->hqd', probs.astype(jnp.bfloat16), vh,
                     preferred_element_type=jnp.float32)                # (H, L, D)

    # (H, L, D) -> (L, C): replaces the old per-head concatenate.
    attn = jnp.transpose(ctx, (1, 0, 2)).reshape(L, C)

    out = jnp.dot(attn.astype(jnp.bfloat16), wo_ref[...],
                  preferred_element_type=jnp.float32) + bo_ref[...]
    # resid_dropout: p = 0.0 (eval) -> identity
    # NOTE: at real configs C % 128 == 0, so this store is lane-dense (toy C=32 is not).
    o_ref[0] = out.astype(o_ref.dtype)


def pack_params(wq, wk, wv, wo, bq, bk, bv, bo):
    """Fuse QKV weights/biases host-side; store weights bf16 (halves VMEM, bf16 MXU)."""
    wqkv = jnp.concatenate([wq, wk, wv], axis=1).astype(jnp.bfloat16)   # (C, 3C)
    bqkv = jnp.concatenate([bq, bk, bv], axis=1).astype(jnp.float32)    # (1, 3C)
    return {"wqkv": wqkv, "wo": wo.astype(jnp.bfloat16),
            "bqkv": bqkv, "bo": bo.astype(jnp.float32)}


def causal_self_attention(x, params, n_head):
    B, L, C = x.shape
    head_dim = C // n_head
    wqkv, wo = params["wqkv"], params["wo"]
    bqkv, bo = params["bqkv"], params["bo"]

    kernel = functools.partial(causal_attn_kernel, n_head=n_head, head_dim=head_dim)
    xo_spec = pl.BlockSpec((1, L, C), lambda b: (b, 0, 0))

    # VMEM budget: resident bf16 weights + double-buffered x/out tiles + f32
    # intermediates, 2x headroom, clamped to [4 MiB, 48 MiB] (safe on v5e/v6e/v7x).
    resident = (wqkv.size + wo.size) * 2 + (bqkv.size + bo.size) * 4
    tiles = 2 * 2 * L * C * x.dtype.itemsize
    interm = (4 * L * C + 2 * n_head * L * L + 2 * n_head * L * head_dim) * 4
    vmem_limit = int(min(max(2 * (resident + tiles + interm), 4 << 20), 48 << 20))

    return pl.pallas_call(
        kernel,
        out_shape=jax.ShapeDtypeStruct((B, L, C), x.dtype),
        grid=(B,),
        in_specs=[xo_spec,
                  pl.BlockSpec((C, 3 * C), lambda b: (0, 0)),
                  pl.BlockSpec((C, C), lambda b: (0, 0)),
                  pl.BlockSpec((1, 3 * C), lambda b: (0, 0)),
                  pl.BlockSpec((1, C), lambda b: (0, 0))],
        out_specs=xo_spec,
        compiler_params=pltpu.CompilerParams(
            dimension_semantics=("parallel",),
            vmem_limit_bytes=vmem_limit),
    )(x, wqkv, wo, bqkv, bo)


def reference_attention_f32(x, wq, wk, wv, wo, bq, bk, bv, bo, n_head):
    """Pure-f32 JAX reference mirroring the PyTorch module (dropout=0)."""
    B, L, C = x.shape
    D = C // n_head
    q = (x @ wq + bq[0]).reshape(B, L, n_head, D).transpose(0, 2, 1, 3)
    k = (x @ wk + bk[0]).reshape(B, L, n_head, D).transpose(0, 2, 1, 3)
    v = (x @ wv + bv[0]).reshape(B, L, n_head, D).transpose(0, 2, 1, 3)
    scores = jnp.einsum("bhqd,bhkd->bhqk", q, k) / math.sqrt(D)
    mask = jnp.tril(jnp.ones((L, L), bool))
    scores = jnp.where(mask[None, None], scores, -jnp.inf)
    probs = jax.nn.softmax(scores, axis=-1)
    out = jnp.einsum("bhqk,bhkd->bhqd", probs, v)
    return out.transpose(0, 2, 1, 3).reshape(B, L, C) @ wo + bo[0]


def reference_attention_bf16(x, params, n_head):
    """Mirrors the kernel's mixed precision (bf16 MXU operands, f32 accum/softmax)."""
    B, L, C = x.shape
    D = C // n_head
    xb = x.astype(jnp.bfloat16)
    qkv = jnp.einsum("blc,cd->bld", xb, params["wqkv"],
                     preferred_element_type=jnp.float32) + params["bqkv"][0]
    q, k, v = qkv[..., :C], qkv[..., C:2 * C], qkv[..., 2 * C:]
    q = (q / math.sqrt(D)).reshape(B, L, n_head, D).transpose(0, 2, 1, 3).astype(jnp.bfloat16)
    k = k.reshape(B, L, n_head, D).transpose(0, 2, 1, 3).astype(jnp.bfloat16)
    v = v.reshape(B, L, n_head, D).transpose(0, 2, 1, 3).astype(jnp.bfloat16)
    scores = jnp.einsum("bhqd,bhkd->bhqk", q, k, preferred_element_type=jnp.float32)
    mask = jnp.tril(jnp.ones((L, L), bool))
    scores = jnp.where(mask[None, None], scores, -jnp.inf)
    probs = jax.nn.softmax(scores, axis=-1)
    ctx = jnp.einsum("bhqk,bhkd->bhqd", probs.astype(jnp.bfloat16), v,
                     preferred_element_type=jnp.float32)
    ctx = ctx.transpose(0, 2, 1, 3).reshape(B, L, C)
    return jnp.einsum("blc,cd->bld", ctx.astype(jnp.bfloat16), params["wo"],
                      preferred_element_type=jnp.float32) + params["bo"][0]


if __name__ == "__main__":
    # Config: n_embd=32, n_head=4 (head_dim=8), block_size >= L, bias=True, dropout=0.0
    B, L, C, n_head = 2, 8, 32, 4

    key = jax.random.PRNGKey(0)
    keys = jax.random.split(key, 9)
    init = lambda k, shape: (0.02 * jax.random.normal(k, shape)).astype(jnp.float32)

    wq = init(keys[0], (C, C)); wk = init(keys[1], (C, C)); wv = init(keys[2], (C, C))
    wo = init(keys[3], (C, C))
    bq = init(keys[4], (1, C)); bk = init(keys[5], (1, C)); bv = init(keys[6], (1, C))
    bo = init(keys[7], (1, C))
    x = jax.random.normal(keys[8], (B, L, C), dtype=jnp.float32)

    params = pack_params(wq, wk, wv, wo, bq, bk, bv, bo)

    out = causal_self_attention(x, params, n_head)
    out = jax.block_until_ready(out)

    ref_mixed = reference_attention_bf16(x, params, n_head)
    ref_f32 = reference_attention_f32(x, wq, wk, wv, wo, bq, bk, bv, bo, n_head)

    assert out.shape == (B, L, C)
    assert jnp.allclose(out, ref_mixed, atol=3e-3, rtol=2e-2), "mismatch vs mixed-precision reference"
    assert jnp.allclose(out, ref_f32, atol=1e-2, rtol=1e-2), "mismatch vs f32 reference"

    print("KERNEL_OK")
</pallas_src>

<mosaic_0001>
module attributes {stable_mosaic.version = 11 : i64} {
  func.func @causal_attn_kernel(%arg0: i32, %arg1: memref<1x8x32xf32, #tpu.memory_space<vmem>>, %arg2: memref<32x96xbf16, #tpu.memory_space<vmem>>, %arg3: memref<32x32xbf16, #tpu.memory_space<vmem>>, %arg4: memref<1x96xf32, #tpu.memory_space<vmem>>, %arg5: memref<1x32xf32, #tpu.memory_space<vmem>>, %arg6: memref<1x8x32xf32, #tpu.memory_space<vmem>>) attributes {dimension_semantics = [#tpu.dimension_semantics<parallel>], iteration_bounds = array<i64: 2>, scalar_prefetch = 0 : i64, scratch_operands = 0 : i64, tpu.core_type = #tpu.core_type<tc>, window_params = [{transform_indices = @transform_0, window_bounds = array<i64: 1, 8, 32>}, {pipeline_mode = #tpu.pipeline_mode<synchronous>, transform_indices = @transform_1, window_bounds = array<i64: 32, 96>}, {pipeline_mode = #tpu.pipeline_mode<synchronous>, transform_indices = @transform_2, window_bounds = array<i64: 32, 32>}, {pipeline_mode = #tpu.pipeline_mode<synchronous>, transform_indices = @transform_3, window_bounds = array<i64: 1, 96>}, {pipeline_mode = #tpu.pipeline_mode<synchronous>, transform_indices = @transform_4, window_bounds = array<i64: 1, 32>}, {transform_indices = @transform_5, window_bounds = array<i64: 1, 8, 32>}]} {
    %c0 = arith.constant 0 : index
    %c0_0 = arith.constant 0 : index
    %c0_1 = arith.constant 0 : index
    %0 = vector.load %arg1[%c0, %c0_0, %c0_1] : memref<1x8x32xf32, #tpu.memory_space<vmem>>, vector<1x8x32xf32>
    %1 = vector.shape_cast %0 : vector<1x8x32xf32> to vector<8x32xf32>
    %2 = arith.truncf %1 : vector<8x32xf32> to vector<8x32xbf16>
    %c0_2 = arith.constant 0 : index
    %c0_3 = arith.constant 0 : index
    %3 = vector.load %arg2[%c0_2, %c0_3] : memref<32x96xbf16, #tpu.memory_space<vmem>>, vector<32x96xbf16>
    %cst = arith.constant dense<0.000000e+00> : vector<8x96xf32>
    %4 = tpu.matmul %2, %3, %cst {dimension_numbers = #tpu.dot_dimension_numbers<[1], [0], [0], [1], [0, 0, 1, 1], [], []>} : vector<8x32xbf16>, vector<32x96xbf16>, vector<8x96xf32> -> vector<8x96xf32>
    %c0_4 = arith.constant 0 : index
    %c0_5 = arith.constant 0 : index
    %5 = vector.load %arg4[%c0_4, %c0_5] : memref<1x96xf32, #tpu.memory_space<vmem>>, vector<1x96xf32>
    %6 = vector.broadcast %5 : vector<1x96xf32> to vector<8x96xf32>
    %7 = arith.addf %4, %6 : vector<8x96xf32>
    %8 = vector.extract_strided_slice %7 {offsets = [0, 0], sizes = [8, 32], strides = [1, 1]} : vector<8x96xf32> to vector<8x32xf32>
    %cst_6 = arith.constant 0.353553385 : f32
    %9 = vector.broadcast %cst_6 : f32 to vector<8x32xf32>
    %10 = arith.mulf %8, %9 : vector<8x32xf32>
    %11 = vector.extract_strided_slice %7 {offsets = [0, 32], sizes = [8, 32], strides = [1, 1]} : vector<8x96xf32> to vector<8x32xf32>
    %12 = vector.extract_strided_slice %7 {offsets = [0, 64], sizes = [8, 32], strides = [1, 1]} : vector<8x96xf32> to vector<8x32xf32>
    %13 = vector.shape_cast %10 : vector<8x32xf32> to vector<8x4x8xf32>
    %14 = tpu.transpose %13, [1, 0, 2] : vector<8x4x8xf32> -> vector<4x8x8xf32>
    %15 = arith.truncf %14 : vector<4x8x8xf32> to vector<4x8x8xbf16>
    %16 = vector.shape_cast %11 : vector<8x32xf32> to vector<8x4x8xf32>
    %17 = tpu.transpose %16, [1, 0, 2] : vector<8x4x8xf32> -> vector<4x8x8xf32>
    %18 = arith.truncf %17 : vector<4x8x8xf32> to vector<4x8x8xbf16>
    %19 = vector.shape_cast %12 : vector<8x32xf32> to vector<8x4x8xf32>
    %20 = tpu.transpose %19, [1, 0, 2] : vector<8x4x8xf32> -> vector<4x8x8xf32>
    %21 = arith.truncf %20 : vector<4x8x8xf32> to vector<4x8x8xbf16>
    "tpu.trace_start"() <{level = 10 : i32, message = "hqd,hkd->hqk"}> : () -> ()
    %cst_7 = arith.constant dense<0.000000e+00> : vector<4x8x8xf32>
    %22 = tpu.matmul %15, %18, %cst_7 {dimension_numbers = #tpu.dot_dimension_numbers<[2], [2], [1], [1], [0, 0, 0, 1, 1, 1], [0], [0]>} : vector<4x8x8xbf16>, vector<4x8x8xbf16>, vector<4x8x8xf32> -> vector<4x8x8xf32>
    "tpu.trace_stop"() : () -> ()
    %23 = tpu.iota {dimensions = array<i32: 1>} : vector<4x8x8xi32>
    %24 = tpu.iota {dimensions = array<i32: 2>} : vector<4x8x8xi32>
    %25 = arith.cmpi sge, %23, %24 : vector<4x8x8xi32>
    %cst_8 = arith.constant 0xFF800000 : f32
    %26 = vector.broadcast %cst_8 : f32 to vector<4x8x8xf32>
    %27 = arith.select %25, %22, %26 : vector<4x8x8xi1>, vector<4x8x8xf32>
    %cst_9 = arith.constant dense<0xFF800000> : vector<4x8xf32>
    %28 = vector.multi_reduction <maximumf>, %27, %cst_9 [2] : vector<4x8x8xf32> to vector<4x8xf32>
    %29 = vector.shape_cast %28 : vector<4x8xf32> to vector<4x8x1xf32>
    %30 = vector.broadcast %29 : vector<4x8x1xf32> to vector<4x8x8xf32>
    %31 = arith.subf %27, %30 : vector<4x8x8xf32>
    %32 = math.exp %31 : vector<4x8x8xf32>
    %cst_10 = arith.constant dense<0.000000e+00> : vector<4x8xf32>
    %33 = vector.multi_reduction <add>, %32, %cst_10 [2] : vector<4x8x8xf32> to vector<4x8xf32>
    %34 = vector.shape_cast %33 : vector<4x8xf32> to vector<4x8x1xf32>
    %35 = tpu.reciprocal %34 {approx = true} : vector<4x8x1xf32> -> vector<4x8x1xf32>
    %36 = vector.broadcast %35 : vector<4x8x1xf32> to vector<4x8x8xf32>
    %37 = arith.mulf %32, %36 : vector<4x8x8xf32>
    %38 = arith.truncf %37 : vector<4x8x8xf32> to vector<4x8x8xbf16>
    "tpu.trace_start"() <{level = 10 : i32, message = "hqk,hkd->hqd"}> : () -> ()
    %cst_11 = arith.constant dense<0.000000e+00> : vector<4x8x8xf32>
    %39 = tpu.matmul %38, %21, %cst_11 {dimension_numbers = #tpu.dot_dimension_numbers<[2], [1], [1], [2], [0, 0, 0, 1, 1, 2], [0], [0]>} : vector<4x8x8xbf16>, vector<4x8x8xbf16>, vector<4x8x8xf32> -> vector<4x8x8xf32>
    "tpu.trace_stop"() : () -> ()
    %40 = tpu.transpose %39, [1, 0, 2] : vector<4x8x8xf32> -> vector<8x4x8xf32>
    %41 = vector.shape_cast %40 : vector<8x4x8xf32> to vector<8x32xf32>
    %42 = arith.truncf %41 : vector<8x32xf32> to vector<8x32xbf16>
    %c0_12 = arith.constant 0 : index
    %c0_13 = arith.constant 0 : index
    %43 = vector.load %arg3[%c0_12, %c0_13] : memref<32x32xbf16, #tpu.memory_space<vmem>>, vector<32x32xbf16>
    %cst_14 = arith.constant dense<0.000000e+00> : vector<8x32xf32>
    %44 = tpu.matmul %42, %43, %cst_14 {dimension_numbers = #tpu.dot_dimension_numbers<[1], [0], [0], [1], [0, 0, 1, 1], [], []>} : vector<8x32xbf16>, vector<32x32xbf16>, vector<8x32xf32> -> vector<8x32xf32>
    %c0_15 = arith.constant 0 : index
    %c0_16 = arith.constant 0 : index
    %45 = vector.load %arg5[%c0_15, %c0_16] : memref<1x32xf32, #tpu.memory_space<vmem>>, vector<1x32xf32>
    %46 = vector.broadcast %45 : vector<1x32xf32> to vector<8x32xf32>
    %47 = arith.addf %44, %46 : vector<8x32xf32>
    %c0_17 = arith.constant 0 : index
    %c0_18 = arith.constant 0 : index
    %c0_19 = arith.constant 0 : index
    %48 = vector.load %arg6[%c0_17, %c0_18, %c0_19] : memref<1x8x32xf32, #tpu.memory_space<vmem>>, vector<1x8x32xf32>
    %49 = vector.shape_cast %48 : vector<1x8x32xf32> to vector<8x32xf32>
    %50 = vector.shape_cast %47 : vector<8x32xf32> to vector<1x8x32xf32>
    tpu.vector_store %arg6[%c0_17, %c0_18, %c0_19], %50 {strides = array<i32>} : memref<1x8x32xf32, #tpu.memory_space<vmem>>, vector<1x8x32xf32>,
    return
  }
  func.func @transform_0(%arg0: i32) -> (i32, i32, i32) {
    %c0_i32 = arith.constant 0 : i32
    %c0_i32_0 = arith.constant 0 : i32
    %c0_i32_1 = arith.constant 0 : i32
    return %arg0, %c0_i32, %c0_i32_0 : i32, i32, i32
  }
  func.func @transform_1(%arg0: i32) -> (i32, i32) {
    %c0_i32 = arith.constant 0 : i32
    %c0_i32_0 = arith.constant 0 : i32
    %c0_i32_1 = arith.constant 0 : i32
    return %c0_i32, %c0_i32_0 : i32, i32
  }
  func.func @transform_2(%arg0: i32) -> (i32, i32) {
    %c0_i32 = arith.constant 0 : i32
    %c0_i32_0 = arith.constant 0 : i32
    %c0_i32_1 = arith.constant 0 : i32
    return %c0_i32, %c0_i32_0 : i32, i32
  }
  func.func @transform_3(%arg0: i32) -> (i32, i32) {
    %c0_i32 = arith.constant 0 : i32
    %c0_i32_0 = arith.constant 0 : i32
    %c0_i32_1 = arith.constant 0 : i32
    return %c0_i32, %c0_i32_0 : i32, i32
  }
  func.func @transform_4(%arg0: i32) -> (i32, i32) {
    %c0_i32 = arith.constant 0 : i32
    %c0_i32_0 = arith.constant 0 : i32
    %c0_i32_1 = arith.constant 0 : i32
    return %c0_i32, %c0_i32_0 : i32, i32
  }
  func.func @transform_5(%arg0: i32) -> (i32, i32, i32) {
    %c0_i32 = arith.constant 0 : i32
    %c0_i32_0 = arith.constant 0 : i32
    %c0_i32_1 = arith.constant 0 : i32
    return %arg0, %c0_i32, %c0_i32_0 : i32, i32, i32
  }
}

</mosaic_0001>

<llo_original>
// kernel: tpu_custom_call.1
$region0: #{tpu_custom_call.1}
  #allocation0 [shape = 'u32[]', space=smem, size = 0x4, offset = 0x4, fixed_abs, tag = 'smem constant byte address 0x4 - core index']
  #allocation1 [shape = 'u32[72,128]{1,0:T(1,128)}', space=vmem, size = 0x9000, scoped, tag = 'internal scratch']
  %s0 = inlined_call_operand.hbm [shape: f32[2,8,32], index: 0, kind: input, shape index: {}]
  %s1 = inlined_call_operand.hbm [shape: bf16[32,96], index: 1, kind: input, shape index: {}]
  %s2 = inlined_call_operand.hbm [shape: bf16[32,32], index: 2, kind: input, shape index: {}]
  %s3 = inlined_call_operand.vmem [shape: f32[1,96], index: 3, kind: input, shape index: {}]
  %s4 = inlined_call_operand.vmem [shape: f32[1,32], index: 4, kind: input, shape index: {}]
  %s5 = inlined_call_operand.hbm [shape: f32[2,8,32], index: 5, kind: output, shape index: {}]
  %s6 = sld [smem:[#allocation0]]
  $region65: #{tpu_custom_call.1} parent=0
    _
  %s8 = ssub.s32 1, %s6
  %s9 = scalar_select 0, %s8, %s6
  $region1: #{tpu_custom_call.1} parent=0
    #allocation2 [shape = 'u8[8192]{0}', space=vmem, size = 0x2000, scoped, tag = 'input window, operand 0']
    #allocation3 [shape = 's32[2]{0}', space=sflag, size = 0x8, scoped, tag = 'scoped memory for tpu_custom_call.1']
    #allocation4 [shape = 's32[2]{0}', space=sflag, size = 0x8, scoped, tag = 'scoped memory for tpu_custom_call.1']
    #allocation5 [shape = 'u8[8192]{0}', space=vmem, size = 0x2000, scoped, tag = 'input window, operand 1, single buffered']
    #allocation6 [shape = 's32[1]{0}', space=sflag, size = 0x4, scoped, tag = 'scoped memory for tpu_custom_call.1']
    #allocation7 [shape = 'u8[8192]{0}', space=vmem, size = 0x2000, scoped, tag = 'input window, operand 2, single buffered']
    #allocation8 [shape = 'u8[8192]{0}', space=vmem, size = 0x2000, scoped, tag = 'output window, operand 0']
    %10 = vsyncpa [#allocation3], 0
    %s11 = scalar_lea.sflag [#allocation3], 1
    %12 = vsyncpa %s11, 0
    %13 = vsyncpa [#allocation6], 0
    %14 = vsyncpa [#allocation4], 0
    %s15 = scalar_lea.sflag [#allocation4], 1
    %16 = vsyncpa %s15, 0
    loop: start=0, step=1, limit=4
    $region2: #{tpu_custom_call.1} parent=1 // loop_pre_header
      _
    $region3: #{tpu_custom_call.1} parent=1 // loop_header
      %s18 = sphi 0, %s22
      %p19 = scmp.ge.s32.totalorder %s18, 4
      %s28 = sphi 0, %s30
      %s31 = sphi 0, %s28
      %s32 = sphi 0, %s31
      %s48 = sphi 0, %s32
      %s52 = sphi 0, %s52
      %s54 = sphi 0, %s52
      %s55 = sphi 0, %s54
      %s69 = sphi 0, %s55
      %s73 = sphi 0, %s73
      %s75 = sphi 0, %s73
      %s76 = sphi 0, %s75
      %s90 = sphi 0, %s76
      %s94 = sphi 0, %s94
      %s96 = sphi 0, %s94
      %s97 = sphi 0, %s96
      %s111 = sphi 0, %s97
      %s115 = sphi 0, %s115
      %s117 = sphi 0, %s115
      %s118 = sphi 0, %s117
      %s132 = sphi 0, %s118
      %s138 = sphi 0, %s140
      %s141 = sphi 0, %s138
      %s142 = sphi 0, %s141
      %s158 = sphi 0, %s142
    $region4: #{tpu_custom_call.1} parent=1 // loop_header_branch
      %21 = sbr.rel (%p19) target = $region8
    $region5: #{tpu_custom_call.1} parent=1 // loop_body
      %s23 = ssub.s32 %s18, 1
      %s24 = ssub.s32 %s18, 2
      %s25 = sadd.s32 %s18, 1
      %s26 = ssub.s32 %s18, %s25
      %p27 = scmp.eq.s32.totalorder %s26, 0
      %s29 = sadd.s32 %s28, 1
      %s30 = scalar_select %p27, %s28, %s29
      %p33 = pneg %p27
      %p34 = scmp.eq.s32.totalorder %s18, 1
      %p35 = por %p33, %p34
      %p36 = scmp.ne.s32.totalorder %s28, %s31
      %p37 = scmp.eq.s32.totalorder %s18, 0
      %p38 = por %p36, %p37
      %p39 = scmp.ne.s32.totalorder %s28, %s31
      %p40 = scmp.eq.s32.totalorder %s23, 1
      %p41 = por %p39, %p40
      %p42 = scmp.ne.s32.totalorder %s31, %s32
      %p43 = scmp.eq.s32.totalorder %s23, 0
      %p44 = por %p42, %p43
      %p45 = scmp.ne.s32.totalorder %s31, %s32
      %p46 = scmp.eq.s32.totalorder %s24, 1
      %p47 = por %p45, %p46
      %p49 = scmp.ne.s32.totalorder %s32, %s48
      %p50 = scmp.eq.s32.totalorder %s24, 0
      %p51 = por %p49, %p50
      %s53 = sadd.s32 %s52, 1
      %p56 = scmp.eq.s32.totalorder %s18, 1
      %p57 = scmp.ne.s32.totalorder %s52, %s54
      %p58 = scmp.eq.s32.totalorder %s18, 0
      %p59 = por %p57, %p58
      %p60 = scmp.ne.s32.totalorder %s52, %s54
      %p61 = scmp.eq.s32.totalorder %s23, 1
      %p62 = por %p60, %p61
      %p63 = scmp.ne.s32.totalorder %s54, %s55
      %p64 = scmp.eq.s32.totalorder %s23, 0
      %p65 = por %p63, %p64
      %p66 = scmp.ne.s32.totalorder %s54, %s55
      %p67 = scmp.eq.s32.totalorder %s24, 1
      %p68 = por %p66, %p67
      %p70 = scmp.ne.s32.totalorder %s55, %s69
      %p71 = scmp.eq.s32.totalorder %s24, 0
      %p72 = por %p70, %p71
      %s74 = sadd.s32 %s73, 1
      %p77 = scmp.eq.s32.totalorder %s18, 1
      %p78 = scmp.ne.s32.totalorder %s73, %s75
      %p79 = scmp.eq.s32.totalorder %s18, 0
      %p80 = por %p78, %p79
      %p81 = scmp.ne.s32.totalorder %s73, %s75
      %p82 = scmp.eq.s32.totalorder %s23, 1
      %p83 = por %p81, %p82
      %p84 = scmp.ne.s32.totalorder %s75, %s76
      %p85 = scmp.eq.s32.totalorder %s23, 0
      %p86 = por %p84, %p85
      %p87 = scmp.ne.s32.totalorder %s75, %s76
      %p88 = scmp.eq.s32.totalorder %s24, 1
      %p89 = por %p87, %p88
      %p91 = scmp.ne.s32.totalorder %s76, %s90
      %p92 = scmp.eq.s32.totalorder %s24, 0
      %p93 = por %p91, %p92
      %s95 = sadd.s32 %s94, 1
      %p98 = scmp.eq.s32.totalorder %s18, 1
      %p99 = scmp.ne.s32.totalorder %s94, %s96
      %p100 = scmp.eq.s32.totalorder %s18, 0
      %p101 = por %p99, %p100
      %p102 = scmp.ne.s32.totalorder %s94, %s96
      %p103 = scmp.eq.s32.totalorder %s23, 1
      %p104 = por %p102, %p103
      %p105 = scmp.ne.s32.totalorder %s96, %s97
      %p106 = scmp.eq.s32.totalorder %s23, 0
      %p107 = por %p105, %p106
      %p108 = scmp.ne.s32.totalorder %s96, %s97
      %p109 = scmp.eq.s32.totalorder %s24, 1
      %p110 = por %p108, %p109
      %p112 = scmp.ne.s32.totalorder %s97, %s111
      %p113 = scmp.eq.s32.totalorder %s24, 0
      %p114 = por %p112, %p113
      %s116 = sadd.s32 %s115, 1
      %p119 = scmp.eq.s32.totalorder %s18, 1
      %p120 = scmp.ne.s32.totalorder %s115, %s117
      %p121 = scmp.eq.s32.totalorder %s18, 0
      %p122 = por %p120, %p121
      %p123 = scmp.ne.s32.totalorder %s115, %s117
      %p124 = scmp.eq.s32.totalorder %s23, 1
      %p125 = por %p123, %p124
      %p126 = scmp.ne.s32.totalorder %s117, %s118
      %p127 = scmp.eq.s32.totalorder %s23, 0
      %p128 = por %p126, %p127
      %p129 = scmp.ne.s32.totalorder %s117, %s118
      %p130 = scmp.eq.s32.totalorder %s24, 1
      %p131 = por %p129, %p130
      %p133 = scmp.ne.s32.totalorder %s118, %s132
      %p134 = scmp.eq.s32.totalorder %s24, 0
      %p135 = por %p133, %p134
      %s136 = ssub.s32 %s18, %s25
      %p137 = scmp.eq.s32.totalorder %s136, 0
      %s139 = sadd.s32 %s138, 1
      %s140 = scalar_select %p137, %s138, %s139
      %p143 = pneg %p137
      %p144 = scmp.eq.s32.totalorder %s18, 1
      %p145 = por %p143, %p144
      %p146 = scmp.ne.s32.totalorder %s138, %s141
      %p147 = scmp.eq.s32.totalorder %s18, 0
      %p148 = por %p146, %p147
      %p149 = scmp.ne.s32.totalorder %s138, %s141
      %p150 = scmp.eq.s32.totalorder %s23, 1
      %p151 = por %p149, %p150
      %p152 = scmp.ne.s32.totalorder %s141, %s142
      %p153 = scmp.eq.s32.totalorder %s23, 0
      %p154 = por %p152, %p153
      %p155 = scmp.ne.s32.totalorder %s141, %s142
      %p156 = scmp.eq.s32.totalorder %s24, 1
      %p157 = por %p155, %p156
      %p159 = scmp.ne.s32.totalorder %s142, %s158
      %p160 = scmp.eq.s32.totalorder %s24, 0
      %p161 = por %p159, %p160
      %p162 = scmp.le.s32.totalorder 1, %s18
      %p163 = scmp.lt.s32.totalorder %s18, 3
      %p164 = pnand %p162, %p163
      %p165 = pneg %p164
      // Predicated region
      $region9: #{tpu_custom_call.1} parent=5 // pred_check
        _
      $region10: #{tpu_custom_call.1} parent=5 // pred_check_branch
        %167 = sbr.rel (%p164) target = $region12
      $region11: #{tpu_custom_call.1} parent=5 // pred_region
        %s168 = ssub.s32 %s18, 1
        // Predicated region
        $region13: #{tpu_custom_call.1} parent=11 // pred_check
          %p169 = pneg %p65
        $region14: #{tpu_custom_call.1} parent=11 // pred_check_branch
          %171 = sbr.rel (%p169) target = $region16
        $region15: #{tpu_custom_call.1} parent=11 // pred_region
          %173 = vsyncadd [#allocation6], 0
          %s174 = sshll.u32 %s1, 4
          %s175 = int_to_ptr.hbm [resolvable:$true] %s174
          %s176 = sshll.u32 [#allocation5], 4
          %s177 = int_to_ptr.vmem [resolvable:$true] %s176
          %182 = dma.hbm_to_vmem [thread:$0]  %s175, 256, %s177, [#allocation6], 64, 64, 4
        $region16: #{tpu_custom_call.1} parent=11 // pred_fallthru
          _
        // Predicated region
        $region17: #{tpu_custom_call.1} parent=11 // pred_check
          %p183 = pneg %p86
        $region18: #{tpu_custom_call.1} parent=11 // pred_check_branch
          %185 = sbr.rel (%p183) target = $region20
        $region19: #{tpu_custom_call.1} parent=11 // pred_region
          %187 = vsyncadd [#allocation6], 0
          %s188 = sshll.u32 %s2, 4
          %s189 = int_to_ptr.hbm [resolvable:$true] %s188
          %s190 = sshll.u32 [#allocation7], 4
          %s191 = int_to_ptr.vmem [resolvable:$true] %s190
          %196 = dma.hbm_to_vmem [thread:$0]  %s189, 256, %s191, [#allocation6], 64, 64, 4
        $region20: #{tpu_custom_call.1} parent=11 // pred_fallthru
          _
        // Predicated region
        $region21: #{tpu_custom_call.1} parent=11 // pred_check
          %p197 = pneg %p107
        $region22: #{tpu_custom_call.1} parent=11 // pred_check_branch
          %199 = sbr.rel (%p197) target = $region24
        $region23: #{tpu_custom_call.1} parent=11 // pred_region
          _
        $region24: #{tpu_custom_call.1} parent=11 // pred_fallthru
          _
        // Predicated region
        $region25: #{tpu_custom_call.1} parent=11 // pred_check
          %p200 = pneg %p128
        $region26: #{tpu_custom_call.1} parent=11 // pred_check_branch
          %202 = sbr.rel (%p200) target = $region28
        $region27: #{tpu_custom_call.1} parent=11 // pred_region
          _
        $region28: #{tpu_custom_call.1} parent=11 // pred_fallthru
          _
      $region12: #{tpu_custom_call.1} parent=5 // pred_fallthru
        _
      %p203 = scmp.lt.s32.totalorder %s18, 2
      // Predicated region
      $region29: #{tpu_custom_call.1} parent=5 // pred_check
        %p204 = pneg %p203
      $region30: #{tpu_custom_call.1} parent=5 // pred_check_branch
        %206 = sbr.rel (%p204) target = $region32
      $region31: #{tpu_custom_call.1} parent=5 // pred_region
        // Predicated region
        $region33: #{tpu_custom_call.1} parent=31 // pred_check
          %p207 = pneg %p38
        $region34: #{tpu_custom_call.1} parent=31 // pred_check_branch
          %209 = sbr.rel (%p207) target = $region36
        $region35: #{tpu_custom_call.1} parent=31 // pred_region
          %s210 = sand.u32 %s28, 1
          %s211 = scalar_lea.sflag [#allocation3], %s210
          %s212 = sand.u32 %s28, 1
          %s213 = smul.addr %s212, 8
          %s214 = scalar_lea.vmem [#allocation2], %s213
          %216 = vsyncadd %s211, 0
          %s217 = smul.addr %s18, 8
          %s218 = scalar_lea.hbm %s0, %s217
          %s220 = sshll.u32 %s218, 4
          %s221 = int_to_ptr.hbm [resolvable:$true] %s220
          %s222 = sshll.u32 %s214, 4
          %s223 = int_to_ptr.vmem [resolvable:$true] %s222
          %225 = dma.hbm_to_vmem [thread:$0]  %s221, 128, %s223, %s211
        $region36: #{tpu_custom_call.1} parent=31 // pred_fallthru
          _
      $region32: #{tpu_custom_call.1} parent=5 // pred_fallthru
        _
      %p226 = scmp.le.s32.totalorder 1, %s18
      %p227 = scmp.lt.s32.totalorder %s18, 3
      %p228 = pnand %p226, %p227
      %p229 = pneg %p228
      // Predicated region
      $region37: #{tpu_custom_call.1} parent=5 // pred_check
        _
      $region38: #{tpu_custom_call.1} parent=5 // pred_check_branch
        %231 = sbr.rel (%p228) target = $region40
      $region39: #{tpu_custom_call.1} parent=5 // pred_region
        %s232 = ssub.s32 %s18, 1
        %s233 = sand.u32 %s31, 1
        %s234 = scalar_lea.sflag [#allocation3], %s233
        %s235 = sand.u32 %s31, 1
        %s236 = smul.addr %s235, 8
        %s237 = scalar_lea.vmem [#allocation2], %s236
        // Predicated region
        $region41: #{tpu_custom_call.1} parent=39 // pred_check
          %p238 = pneg %p44
        $region42: #{tpu_custom_call.1} parent=39 // pred_check_branch
          %240 = sbr.rel (%p238) target = $region44
        $region43: #{tpu_custom_call.1} parent=39 // pred_region
          %242 = dma.done %s234, 128
        $region44: #{tpu_custom_call.1} parent=39 // pred_fallthru
          _
        // Predicated region
        $region45: #{tpu_custom_call.1} parent=39 // pred_check
          %p243 = pneg %p65
        $region46: #{tpu_custom_call.1} parent=39 // pred_check_branch
          %245 = sbr.rel (%p243) target = $region48
        $region47: #{tpu_custom_call.1} parent=39 // pred_region
          %247 = dma.done [#allocation6], 256
        $region48: #{tpu_custom_call.1} parent=39 // pred_fallthru
          _
        // Predicated region
        $region49: #{tpu_custom_call.1} parent=39 // pred_check
          %p248 = pneg %p86
        $region50: #{tpu_custom_call.1} parent=39 // pred_check_branch
          %250 = sbr.rel (%p248) target = $region52
        $region51: #{tpu_custom_call.1} parent=39 // pred_region
          %252 = dma.done [#allocation6], 256
        $region52: #{tpu_custom_call.1} parent=39 // pred_fallthru
          _
        %s253 = sand.u32 %s31, 1
        %s254 = scalar_lea.sflag [#allocation3], %s253
        %s255 = sand.u32 %s31, 1
        %s256 = smul.addr %s255, 8
        %s257 = scalar_lea.vmem [#allocation2], %s256
        %p258 = pneg %p44
        %p259 = pneg %p41
        %p260 = pneg %p65
        %p261 = pneg %p62
        %p262 = pneg %p86
        %p263 = pneg %p83
        %p264 = pneg %p107
        %p265 = pneg %p104
        %p266 = pneg %p128
        %p267 = pneg %p125
        %p268 = pneg %p154
        %p269 = pneg %p151
        %s270 = sand.u32 %s141, 1
        %s271 = scalar_lea.sflag [#allocation4], %s270
        %s272 = sand.u32 %s141, 1
        %s273 = smul.addr %s272, 8
        %s274 = scalar_lea.vmem [#allocation8], %s273
        %v276 = vld [vmem:[%s237] sm:$0xff]
        %v277 = vpack.c.bf16 %v276, %v276
        %v278 = vld [vmem:[#allocation5] sm:$0xf]
        %v279 = vld [vmem:[#allocation5 + $0x4] sm:$0xf]
        %v280 = vld [vmem:[#allocation5 + $0x8] sm:$0xf]
        %v281 = vld [vmem:[#allocation5 + $0xc] sm:$0xf]
        %v282 = vld [vmem:[%s3] sm:$0x1]
        %v284 = vperm.slane %v282, 0
        %v290 = vunpack.c.l.b16 %v278
        %v291 = vunpack.c.l.b16 %v279
        %v292 = vunpack.c.l.b16 %v280
        %v293 = vunpack.c.l.b16 %v281
        %v294 = vpack.c.b16 %v291, %v290
        %v295 = vpack.c.b16 %v293, %v292
        %vm298 = vcmask 261120
        %v300 = vsel %vm298, %v277, 0
        %302 = vmatpush.bf16.msra.mxu0 0
        %303 = vmatpush.bf16.msra.mxu0 0
        %304 = vmatpush.bf16.msra.mxu0 0
        %305 = vmatpush.bf16.msra.mxu0 0
        %306 = vmatpush.bf16.msra.mxu0 0
        %307 = vmatpush.bf16.msra.mxu0 0
        %308 = vmatpush.bf16.msra.mxu0 %v295
        %309 = vmatpush.bf16.msra.mxu0 %v294
        %310 = vmatmul.bf16.gmra.mxu0 %v300
        %v311 = vpop.f32.mrf.mxu0
        %v312 = vadd.f32 %v284, %v311
        %v313 = vpop.f32.mrf.mxu0
        %314 = vdwg.mxu0
        %v315 = vmul.f32 %v312, 0.35355338
        %317 = vrot.lane.b32.xlu0 %v315, 120
        %v318 = vpop.permute.xlu0 %317
        %320 = vrot.lane.b32.xlu0 %v315, 112
        %v321 = vpop.permute.xlu0 %320
        %323 = vrot.lane.b32.xlu0 %v315, 104
        %v324 = vpop.permute.xlu0 %323
        %v326 = vrot.slane %v321, 4
        %vm327 = vcmask 1047556
        %v328 = vsel %vm327, %v326, %v315
        %v329 = vrot.slane %v315, 4
        %v330 = vsel %vm327, %v321, %v329
        %v332 = vunpack.c.l.s4 1983009808
        %v333 = vunpack.c.0.s8 %v332
        %v334 = vperm.slane %v328, %v333
        %v336 = vunpack.c.l.s4 1983009808
        %v337 = vunpack.c.0.s8 %v336
        %v338 = vperm.slane %v330, %v337
        %v339 = vrot.slane %v324, 4
        %v340 = vsel %vm327, %v339, %v318
        %v341 = vrot.slane %v318, 4
        %v342 = vsel %vm327, %v324, %v341
        %v344 = vunpack.c.l.s4 1983009808
        %v345 = vunpack.c.0.s8 %v344
        %v346 = vperm.slane %v340, %v345
        %v348 = vunpack.c.l.s4 1983009808
        %v349 = vunpack.c.0.s8 %v348
        %v350 = vperm.slane %v342, %v349
        %v351 = vrot.slane %v346, 4
        %v352 = vsel %vm327, %v351, %v334
        %v353 = vrot.slane %v334, 4
        %v354 = vsel %vm327, %v346, %v353
        %v356 = vunpack.c.l.s4 1934713408
        %v357 = vunpack.c.0.s8 %v356
        %v358 = vperm.slane %v352, %v357
        %v360 = vunpack.c.l.s4 1934713408
        %v361 = vunpack.c.0.s8 %v360
        %v362 = vperm.slane %v354, %v361
        %v363 = vrot.slane %v350, 4
        %v364 = vsel %vm327, %v363, %v338
        %v365 = vrot.slane %v338, 4
        %v366 = vsel %vm327, %v350, %v365
        %v368 = vunpack.c.l.s4 1934713408
        %v369 = vunpack.c.0.s8 %v368
        %v370 = vperm.slane %v364, %v369
        %v372 = vunpack.c.l.s4 1934713408
        %v373 = vunpack.c.0.s8 %v372
        %v374 = vperm.slane %v366, %v373
        %v375 = vrot.slane %v358, 4
        %v376 = vsel %vm327, 0.0, %v375
        %v377 = vrot.slane %v362, 4
        %v378 = vsel %vm327, 0.0, %v377
        %v379 = vrot.slane %v370, 4
        %v380 = vsel %vm327, 0.0, %v379
        %v381 = vrot.slane %v374, 4
        %v382 = vsel %vm327, 0.0, %v381
        %v383 = vsel %vm327, %v377, %v358
        %v385 = vunpack.c.l.s4 1983009808
        %v386 = vunpack.c.0.s8 %v385
        %v387 = vperm.slane %v383, %v386
        %v388 = vrot.slane %v378, 4
        %v389 = vsel %vm327, %v388, %v376
        %v391 = vunpack.c.l.s4 1983009808
        %v392 = vunpack.c.0.s8 %v391
        %v393 = vperm.slane %v389, %v392
        %v394 = vsel %vm327, %v381, %v370
        %v396 = vunpack.c.l.s4 1983009808
        %v397 = vunpack.c.0.s8 %v396
        %v398 = vperm.slane %v394, %v397
        %v399 = vrot.slane %v382, 4
        %v400 = vsel %vm327, %v399, %v380
        %v402 = vunpack.c.l.s4 1983009808
        %v403 = vunpack.c.0.s8 %v402
        %v404 = vperm.slane %v400, %v403
        %v405 = vrot.slane %v393, 4
        %v406 = vsel %vm327, %v405, %v387
        %v407 = vrot.slane %v387, 4
        %v408 = vsel %vm327, %v393, %v407
        %v410 = vunpack.c.l.s4 1934713408
        %v411 = vunpack.c.0.s8 %v410
        %v412 = vperm.slane %v406, %v411
        %v414 = vunpack.c.l.s4 1934713408
        %v415 = vunpack.c.0.s8 %v414
        %v416 = vperm.slane %v408, %v415
        %v417 = vrot.slane %v404, 4
        %v418 = vsel %vm327, %v417, %v398
        %v419 = vrot.slane %v398, 4
        %v420 = vsel %vm327, %v404, %v419
        %v422 = vunpack.c.l.s4 1934713408
        %v423 = vunpack.c.0.s8 %v422
        %v424 = vperm.slane %v418, %v423
        %v426 = vunpack.c.l.s4 1934713408
        %v427 = vunpack.c.0.s8 %v426
        %v428 = vperm.slane %v420, %v427
        %v429 = vrot.slane %v424, 4
        %v430 = vsel %vm327, %v429, %v412
        %v431 = vrot.slane %v412, 4
        %v432 = vsel %vm327, %v424, %v431
        %v433 = vrot.slane %v428, 4
        %v434 = vsel %vm327, %v433, %v416
        %v435 = vrot.slane %v416, 4
        %v436 = vsel %vm327, %v428, %v435
        %v437 = vpack.c.bf16 %v430, %v430
        %v438 = vpack.c.bf16 %v432, %v432
        %v439 = vpack.c.bf16 %v434, %v434
        %v440 = vpack.c.bf16 %v436, %v436
        %442 = vrot.lane.b32.xlu0 %v312, 120
        %v443 = vpop.permute.xlu0 %442
        %444 = vrot.lane.b32.xlu0 %v312, 112
        %v445 = vpop.permute.xlu0 %444
        %446 = vrot.lane.b32.xlu0 %v312, 104
        %v447 = vpop.permute.xlu0 %446
        %448 = vrot.lane.b32.xlu0 %v312, 96
        %v449 = vpop.permute.xlu0 %448
        %450 = vrot.lane.b32.xlu0 %v443, 96
        %v451 = vpop.permute.xlu0 %450
        %452 = vrot.lane.b32.xlu0 %v445, 96
        %v453 = vpop.permute.xlu0 %452
        %454 = vrot.lane.b32.xlu0 %v447, 96
        %v455 = vpop.permute.xlu0 %454
        %v460 = vrot.slane %v453, 4
        %v461 = vsel %vm327, %v460, %v449
        %v462 = vrot.slane %v449, 4
        %v463 = vsel %vm327, %v453, %v462
        %v465 = vunpack.c.l.s4 1983009808
        %v466 = vunpack.c.0.s8 %v465
        %v467 = vperm.slane %v461, %v466
        %v469 = vunpack.c.l.s4 1983009808
        %v470 = vunpack.c.0.s8 %v469
        %v471 = vperm.slane %v463, %v470
        %v472 = vrot.slane %v455, 4
        %v473 = vsel %vm327, %v472, %v451
        %v474 = vrot.slane %v451, 4
        %v475 = vsel %vm327, %v455, %v474
        %v477 = vunpack.c.l.s4 1983009808
        %v478 = vunpack.c.0.s8 %v477
        %v479 = vperm.slane %v473, %v478
        %v481 = vunpack.c.l.s4 1983009808
        %v482 = vunpack.c.0.s8 %v481
        %v483 = vperm.slane %v475, %v482
        %v484 = vrot.slane %v479, 4
        %v485 = vsel %vm327, %v484, %v467
        %v486 = vrot.slane %v467, 4
        %v487 = vsel %vm327, %v479, %v486
        %v489 = vunpack.c.l.s4 1934713408
        %v490 = vunpack.c.0.s8 %v489
        %v491 = vperm.slane %v485, %v490
        %v493 = vunpack.c.l.s4 1934713408
        %v494 = vunpack.c.0.s8 %v493
        %v495 = vperm.slane %v487, %v494
        %v496 = vrot.slane %v483, 4
        %v497 = vsel %vm327, %v496, %v471
        %v498 = vrot.slane %v471, 4
        %v499 = vsel %vm327, %v483, %v498
        %v501 = vunpack.c.l.s4 1934713408
        %v502 = vunpack.c.0.s8 %v501
        %v503 = vperm.slane %v497, %v502
        %v505 = vunpack.c.l.s4 1934713408
        %v506 = vunpack.c.0.s8 %v505
        %v507 = vperm.slane %v499, %v506
        %v508 = vrot.slane %v491, 4
        %v509 = vsel %vm327, 0.0, %v508
        %v510 = vrot.slane %v495, 4
        %v511 = vsel %vm327, 0.0, %v510
        %v512 = vrot.slane %v503, 4
        %v513 = vsel %vm327, 0.0, %v512
        %v514 = vrot.slane %v507, 4
        %v515 = vsel %vm327, 0.0, %v514
        %v516 = vsel %vm327, %v510, %v491
        %v518 = vunpack.c.l.s4 1983009808
        %v519 = vunpack.c.0.s8 %v518
        %v520 = vperm.slane %v516, %v519
        %v521 = vrot.slane %v511, 4
        %v522 = vsel %vm327, %v521, %v509
        %v524 = vunpack.c.l.s4 1983009808
        %v525 = vunpack.c.0.s8 %v524
        %v526 = vperm.slane %v522, %v525
        %v527 = vsel %vm327, %v514, %v503
        %v529 = vunpack.c.l.s4 1983009808
        %v530 = vunpack.c.0.s8 %v529
        %v531 = vperm.slane %v527, %v530
        %v532 = vrot.slane %v515, 4
        %v533 = vsel %vm327, %v532, %v513
        %v535 = vunpack.c.l.s4 1983009808
        %v536 = vunpack.c.0.s8 %v535
        %v537 = vperm.slane %v533, %v536
        %v538 = vrot.slane %v526, 4
        %v539 = vsel %vm327, %v538, %v520
        %v540 = vrot.slane %v520, 4
        %v541 = vsel %vm327, %v526, %v540
        %v543 = vunpack.c.l.s4 1934713408
        %v544 = vunpack.c.0.s8 %v543
        %v545 = vperm.slane %v539, %v544
        %v547 = vunpack.c.l.s4 1934713408
        %v548 = vunpack.c.0.s8 %v547
        %v549 = vperm.slane %v541, %v548
        %v550 = vrot.slane %v537, 4
        %v551 = vsel %vm327, %v550, %v531
        %v552 = vrot.slane %v531, 4
        %v553 = vsel %vm327, %v537, %v552
        %v555 = vunpack.c.l.s4 1934713408
        %v556 = vunpack.c.0.s8 %v555
        %v557 = vperm.slane %v551, %v556
        %v559 = vunpack.c.l.s4 1934713408
        %v560 = vunpack.c.0.s8 %v559
        %v561 = vperm.slane %v553, %v560
        %v562 = vrot.slane %v557, 4
        %v563 = vsel %vm327, %v562, %v545
        %v564 = vrot.slane %v545, 4
        %v565 = vsel %vm327, %v557, %v564
        %v566 = vrot.slane %v561, 4
        %v567 = vsel %vm327, %v566, %v549
        %v568 = vrot.slane %v549, 4
        %v569 = vsel %vm327, %v561, %v568
        %v570 = vpack.c.bf16 %v563, %v563
        %v571 = vpack.c.bf16 %v565, %v565
        %v572 = vpack.c.bf16 %v567, %v567
        %v573 = vpack.c.bf16 %v569, %v569
        %574 = vrot.lane.b32.xlu0 %v312, 64
        %v575 = vpop.permute.xlu0 %574
        %576 = vrot.lane.b32.xlu0 %v443, 64
        %v577 = vpop.permute.xlu0 %576
        %578 = vrot.lane.b32.xlu0 %v445, 64
        %v579 = vpop.permute.xlu0 %578
        %580 = vrot.lane.b32.xlu0 %v447, 64
        %v581 = vpop.permute.xlu0 %580
        %v586 = vrot.slane %v579, 4
        %v587 = vsel %vm327, %v586, %v575
        %v588 = vrot.slane %v575, 4
        %v589 = vsel %vm327, %v579, %v588
        %v591 = vunpack.c.l.s4 1983009808
        %v592 = vunpack.c.0.s8 %v591
        %v593 = vperm.slane %v587, %v592
        %v595 = vunpack.c.l.s4 1983009808
        %v596 = vunpack.c.0.s8 %v595
        %v597 = vperm.slane %v589, %v596
        %v598 = vrot.slane %v581, 4
        %v599 = vsel %vm327, %v598, %v577
        %v600 = vrot.slane %v577, 4
        %v601 = vsel %vm327, %v581, %v600
        %v603 = vunpack.c.l.s4 1983009808
        %v604 = vunpack.c.0.s8 %v603
        %v605 = vperm.slane %v599, %v604
        %v607 = vunpack.c.l.s4 1983009808
        %v608 = vunpack.c.0.s8 %v607
        %v609 = vperm.slane %v601, %v608
        %v610 = vrot.slane %v605, 4
        %v611 = vsel %vm327, %v610, %v593
        %v612 = vrot.slane %v593, 4
        %v613 = vsel %vm327, %v605, %v612
        %v615 = vunpack.c.l.s4 1934713408
        %v616 = vunpack.c.0.s8 %v615
        %v617 = vperm.slane %v611, %v616
        %v619 = vunpack.c.l.s4 1934713408
        %v620 = vunpack.c.0.s8 %v619
        %v621 = vperm.slane %v613, %v620
        %v622 = vrot.slane %v609, 4
        %v623 = vsel %vm327, %v622, %v597
        %v624 = vrot.slane %v597, 4
        %v625 = vsel %vm327, %v609, %v624
        %v627 = vunpack.c.l.s4 1934713408
        %v628 = vunpack.c.0.s8 %v627
        %v629 = vperm.slane %v623, %v628
        %v631 = vunpack.c.l.s4 1934713408
        %v632 = vunpack.c.0.s8 %v631
        %v633 = vperm.slane %v625, %v632
        %v634 = vrot.slane %v617, 4
        %v635 = vsel %vm327, 0.0, %v634
        %v636 = vrot.slane %v621, 4
        %v637 = vsel %vm327, 0.0, %v636
        %v638 = vrot.slane %v629, 4
        %v639 = vsel %vm327, 0.0, %v638
        %v640 = vrot.slane %v633, 4
        %v641 = vsel %vm327, 0.0, %v640
        %v642 = vsel %vm327, %v636, %v617
        %v644 = vunpack.c.l.s4 1983009808
        %v645 = vunpack.c.0.s8 %v644
        %v646 = vperm.slane %v642, %v645
        %v647 = vrot.slane %v637, 4
        %v648 = vsel %vm327, %v647, %v635
        %v650 = vunpack.c.l.s4 1983009808
        %v651 = vunpack.c.0.s8 %v650
        %v652 = vperm.slane %v648, %v651
        %v653 = vsel %vm327, %v640, %v629
        %v655 = vunpack.c.l.s4 1983009808
        %v656 = vunpack.c.0.s8 %v655
        %v657 = vperm.slane %v653, %v656
        %v658 = vrot.slane %v641, 4
        %v659 = vsel %vm327, %v658, %v639
        %v661 = vunpack.c.l.s4 1983009808
        %v662 = vunpack.c.0.s8 %v661
        %v663 = vperm.slane %v659, %v662
        %v664 = vrot.slane %v652, 4
        %v665 = vsel %vm327, %v664, %v646
        %v666 = vrot.slane %v646, 4
        %v667 = vsel %vm327, %v652, %v666
        %v669 = vunpack.c.l.s4 1934713408
        %v670 = vunpack.c.0.s8 %v669
        %v671 = vperm.slane %v665, %v670
        %v673 = vunpack.c.l.s4 1934713408
        %v674 = vunpack.c.0.s8 %v673
        %v675 = vperm.slane %v667, %v674
        %v676 = vrot.slane %v663, 4
        %v677 = vsel %vm327, %v676, %v657
        %v678 = vrot.slane %v657, 4
        %v679 = vsel %vm327, %v663, %v678
        %v681 = vunpack.c.l.s4 1934713408
        %v682 = vunpack.c.0.s8 %v681
        %v683 = vperm.slane %v677, %v682
        %v685 = vunpack.c.l.s4 1934713408
        %v686 = vunpack.c.0.s8 %v685
        %v687 = vperm.slane %v679, %v686
        %v688 = vrot.slane %v683, 4
        %v689 = vsel %vm327, %v688, %v671
        %v690 = vrot.slane %v671, 4
        %v691 = vsel %vm327, %v683, %v690
        %v692 = vrot.slane %v687, 4
        %v693 = vsel %vm327, %v692, %v675
        %v694 = vrot.slane %v675, 4
        %v695 = vsel %vm327, %v687, %v694
        %v696 = vpack.c.bf16 %v689, %v689
        %v697 = vpack.c.bf16 %v691, %v691
        %v698 = vpack.c.bf16 %v693, %v693
        %v699 = vpack.c.bf16 %v695, %v695
        %vm700 = vcmask 64512
        %v702 = vsel %vm700, %v437, 0
        %v705 = vsel %vm700, %v570, 0
        %707 = vmatpush.bf16.xpose.msra.mxu0 0
        %708 = vmatpush.bf16.xpose.msra.mxu0 0
        %709 = vmatpush.bf16.xpose.msra.mxu0 0
        %710 = vmatpush.bf16.xpose.msra.mxu0 0
        %711 = vmatpush.bf16.xpose.msra.mxu0 0
        %712 = vmatpush.bf16.xpose.msra.mxu0 0
        %713 = vmatpush.bf16.xpose.msra.mxu0 0
        %714 = vmatpush.bf16.xpose.msra.mxu0 %v705
        %715 = vmatmul.bf16.gmra.mxu0 %v702
        %v716 = vpop.f32.mrf.mxu0
        %v717 = vadd.f32 0.0, %v716
        %v718 = vpop.f32.mrf.mxu0
        %719 = vdwg.mxu0
        %v721 = vsel %vm700, %v438, 0
        %v724 = vsel %vm700, %v571, 0
        %726 = vmatpush.bf16.xpose.msra.mxu0 0
        %727 = vmatpush.bf16.xpose.msra.mxu0 0
        %728 = vmatpush.bf16.xpose.msra.mxu0 0
        %729 = vmatpush.bf16.xpose.msra.mxu0 0
        %730 = vmatpush.bf16.xpose.msra.mxu0 0
        %731 = vmatpush.bf16.xpose.msra.mxu0 0
        %732 = vmatpush.bf16.xpose.msra.mxu0 0
        %733 = vmatpush.bf16.xpose.msra.mxu0 %v724
        %734 = vmatmul.bf16.gmra.mxu0 %v721
        %v735 = vpop.f32.mrf.mxu0
        %v736 = vadd.f32 0.0, %v735
        %v737 = vpop.f32.mrf.mxu0
        %738 = vdwg.mxu0
        %v740 = vsel %vm700, %v439, 0
        %v743 = vsel %vm700, %v572, 0
        %745 = vmatpush.bf16.xpose.msra.mxu0 0
        %746 = vmatpush.bf16.xpose.msra.mxu0 0
        %747 = vmatpush.bf16.xpose.msra.mxu0 0
        %748 = vmatpush.bf16.xpose.msra.mxu0 0
        %749 = vmatpush.bf16.xpose.msra.mxu0 0
        %750 = vmatpush.bf16.xpose.msra.mxu0 0
        %751 = vmatpush.bf16.xpose.msra.mxu0 0
        %752 = vmatpush.bf16.xpose.msra.mxu0 %v743
        %753 = vmatmul.bf16.gmra.mxu0 %v740
        %v754 = vpop.f32.mrf.mxu0
        %v755 = vadd.f32 0.0, %v754
        %v756 = vpop.f32.mrf.mxu0
        %757 = vdwg.mxu0
        %v759 = vsel %vm700, %v440, 0
        %v762 = vsel %vm700, %v573, 0
        %764 = vmatpush.bf16.xpose.msra.mxu0 0
        %765 = vmatpush.bf16.xpose.msra.mxu0 0
        %766 = vmatpush.bf16.xpose.msra.mxu0 0
        %767 = vmatpush.bf16.xpose.msra.mxu0 0
        %768 = vmatpush.bf16.xpose.msra.mxu0 0
        %769 = vmatpush.bf16.xpose.msra.mxu0 0
        %770 = vmatpush.bf16.xpose.msra.mxu0 0
        %771 = vmatpush.bf16.xpose.msra.mxu0 %v762
        %772 = vmatmul.bf16.gmra.mxu0 %v759
        %v773 = vpop.f32.mrf.mxu0
        %v774 = vadd.f32 0.0, %v773
        %v775 = vpop.f32.mrf.mxu0
        %776 = vdwg.mxu0
        %v777 = vlaneseq
        %v778 = vshrl.u32 %v777, 7
        %v779 = vlaneseq
        %v780 = vand.u32 %v779, 127
        %vm781 = vcmp.ge.s32.totalorder %v778, %v780
        %v782 = vsel %vm781, %v717, -inf
        %v783 = vsel %vm781, %v736, -inf
        %v784 = vsel %vm781, %v755, -inf
        %v785 = vsel %vm781, %v774, -inf
        %v786 = vsel %vm700, %v782, -inf
        %787 = vmax.xlane.f32.xlu0 %v786
        %v788 = vpop.xlane.xlu0 %787
        %v789 = vsel %vm700, %v783, -inf
        %790 = vmax.xlane.f32.xlu0 %v789
        %v791 = vpop.xlane.xlu0 %790
        %v792 = vsel %vm700, %v784, -inf
        %793 = vmax.xlane.f32.xlu0 %v792
        %v794 = vpop.xlane.xlu0 %793
        %v795 = vsel %vm700, %v785, -inf
        %796 = vmax.xlane.f32.xlu0 %v795
        %v797 = vpop.xlane.xlu0 %796
        %v798 = vsub.f32 %v782, %v788
        %v799 = vsub.f32 %v783, %v791
        %v800 = vsub.f32 %v784, %v794
        %v801 = vsub.f32 %v785, %v797
        %v802 = vmul.f32 %v798, 1.442695
        %v803 = vpow.pop %v802
        %v804 = vmul.f32 %v799, 1.442695
        %v805 = vpow.pop %v804
        %v806 = vmul.f32 %v800, 1.442695
        %v807 = vpow.pop %v806
        %v808 = vmul.f32 %v801, 1.442695
        %v809 = vpow.pop %v808
        %v810 = vsel %vm700, %v803, 0.0
        %811 = vadd.xlane.f32.xlu0 %v810
        %v812 = vpop.xlane.xlu0 %811
        %v813 = vsel %vm700, %v805, 0.0
        %814 = vadd.xlane.f32.xlu0 %v813
        %v815 = vpop.xlane.xlu0 %814
        %v816 = vsel %vm700, %v807, 0.0
        %817 = vadd.xlane.f32.xlu0 %v816
        %v818 = vpop.xlane.xlu0 %817
        %v819 = vsel %vm700, %v809, 0.0
        %820 = vadd.xlane.f32.xlu0 %v819
        %v821 = vpop.xlane.xlu0 %820
        %v822 = vrcp.pop %v812
        %v823 = vrcp.pop %v815
        %v824 = vrcp.pop %v818
        %v825 = vrcp.pop %v821
        %v826 = vmul.f32 %v803, %v822
        %v827 = vmul.f32 %v805, %v823
        %v828 = vmul.f32 %v807, %v824
        %v829 = vmul.f32 %v809, %v825
        %v830 = vpack.c.bf16 %v826, %v826
        %v831 = vpack.c.bf16 %v827, %v827
        %v832 = vpack.c.bf16 %v828, %v828
        %v833 = vpack.c.bf16 %v829, %v829
        %v835 = vsel %vm700, %v830, 0
        %vm837 = vcmask 1043456
        %v839 = vsel %vm837, %v696, 0
        %841 = vmatpush.bf16.msra.mxu0 0
        %842 = vmatpush.bf16.msra.mxu0 0
        %843 = vmatpush.bf16.msra.mxu0 0
        %844 = vmatpush.bf16.msra.mxu0 0
        %845 = vmatpush.bf16.msra.mxu0 0
        %846 = vmatpush.bf16.msra.mxu0 0
        %847 = vmatpush.bf16.msra.mxu0 0
        %848 = vmatpush.bf16.msra.mxu0 %v839
        %849 = vmatmul.bf16.gmra.mxu0 %v835
        %v850 = vpop.f32.mrf.mxu0
        %v851 = vadd.f32 0.0, %v850
        %v852 = vpop.f32.mrf.mxu0
        %853 = vdwg.mxu0
        %v855 = vsel %vm700, %v831, 0
        %v858 = vsel %vm837, %v697, 0
        %860 = vmatpush.bf16.msra.mxu0 0
        %861 = vmatpush.bf16.msra.mxu0 0
        %862 = vmatpush.bf16.msra.mxu0 0
        %863 = vmatpush.bf16.msra.mxu0 0
        %864 = vmatpush.bf16.msra.mxu0 0
        %865 = vmatpush.bf16.msra.mxu0 0
        %866 = vmatpush.bf16.msra.mxu0 0
        %867 = vmatpush.bf16.msra.mxu0 %v858
        %868 = vmatmul.bf16.gmra.mxu0 %v855
        %v869 = vpop.f32.mrf.mxu0
        %v870 = vadd.f32 0.0, %v869
        %v871 = vpop.f32.mrf.mxu0
        %872 = vdwg.mxu0
        %v874 = vsel %vm700, %v832, 0
        %v877 = vsel %vm837, %v698, 0
        %879 = vmatpush.bf16.msra.mxu0 0
        %880 = vmatpush.bf16.msra.mxu0 0
        %881 = vmatpush.bf16.msra.mxu0 0
        %882 = vmatpush.bf16.msra.mxu0 0
        %883 = vmatpush.bf16.msra.mxu0 0
        %884 = vmatpush.bf16.msra.mxu0 0
        %885 = vmatpush.bf16.msra.mxu0 0
        %886 = vmatpush.bf16.msra.mxu0 %v877
        %887 = vmatmul.bf16.gmra.mxu0 %v874
        %v888 = vpop.f32.mrf.mxu0
        %v889 = vadd.f32 0.0, %v888
        %v890 = vpop.f32.mrf.mxu0
        %891 = vdwg.mxu0
        %v893 = vsel %vm700, %v833, 0
        %v896 = vsel %vm837, %v699, 0
        %898 = vmatpush.bf16.msra.mxu0 0
        %899 = vmatpush.bf16.msra.mxu0 0
        %900 = vmatpush.bf16.msra.mxu0 0
        %901 = vmatpush.bf16.msra.mxu0 0
        %902 = vmatpush.bf16.msra.mxu0 0
        %903 = vmatpush.bf16.msra.mxu0 0
        %904 = vmatpush.bf16.msra.mxu0 0
        %905 = vmatpush.bf16.msra.mxu0 %v896
        %906 = vmatmul.bf16.gmra.mxu0 %v893
        %v907 = vpop.f32.mrf.mxu0
        %v908 = vadd.f32 0.0, %v907
        %v909 = vpop.f32.mrf.mxu0
        %910 = vdwg.mxu0
        %v911 = vrot.slane %v889, 4
        %v912 = vsel %vm327, %v911, %v851
        %v913 = vrot.slane %v851, 4
        %v914 = vsel %vm327, %v889, %v913
        %v916 = vunpack.c.l.s4 1983009808
        %v917 = vunpack.c.0.s8 %v916
        %v918 = vperm.slane %v912, %v917
        %v920 = vunpack.c.l.s4 1983009808
        %v921 = vunpack.c.0.s8 %v920
        %v922 = vperm.slane %v914, %v921
        %v923 = vrot.slane %v908, 4
        %v924 = vsel %vm327, %v923, %v870
        %v925 = vrot.slane %v870, 4
        %v926 = vsel %vm327, %v908, %v925
        %v928 = vunpack.c.l.s4 1983009808
        %v929 = vunpack.c.0.s8 %v928
        %v930 = vperm.slane %v924, %v929
        %v932 = vunpack.c.l.s4 1983009808
        %v933 = vunpack.c.0.s8 %v932
        %v934 = vperm.slane %v926, %v933
        %v935 = vrot.slane %v930, 4
        %v936 = vsel %vm327, %v935, %v918
        %v937 = vrot.slane %v918, 4
        %v938 = vsel %vm327, %v930, %v937
        %v940 = vunpack.c.l.s4 1934713408
        %v941 = vunpack.c.0.s8 %v940
        %v942 = vperm.slane %v936, %v941
        %v944 = vunpack.c.l.s4 1934713408
        %v945 = vunpack.c.0.s8 %v944
        %v946 = vperm.slane %v938, %v945
        %v947 = vrot.slane %v934, 4
        %v948 = vsel %vm327, %v947, %v922
        %v949 = vrot.slane %v922, 4
        %v950 = vsel %vm327, %v934, %v949
        %v952 = vunpack.c.l.s4 1934713408
        %v953 = vunpack.c.0.s8 %v952
        %v954 = vperm.slane %v948, %v953
        %v956 = vunpack.c.l.s4 1934713408
        %v957 = vunpack.c.0.s8 %v956
        %v958 = vperm.slane %v950, %v957
        %v959 = vrot.slane %v942, 4
        %v960 = vsel %vm327, 0.0, %v959
        %v961 = vrot.slane %v946, 4
        %v962 = vsel %vm327, 0.0, %v961
        %v963 = vrot.slane %v954, 4
        %v964 = vsel %vm327, 0.0, %v963
        %v965 = vrot.slane %v958, 4
        %v966 = vsel %vm327, 0.0, %v965
        %v967 = vsel %vm327, %v961, %v942
        %v969 = vunpack.c.l.s4 1983009808
        %v970 = vunpack.c.0.s8 %v969
        %v971 = vperm.slane %v967, %v970
        %v972 = vrot.slane %v962, 4
        %v973 = vsel %vm327, %v972, %v960
        %v975 = vunpack.c.l.s4 1983009808
        %v976 = vunpack.c.0.s8 %v975
        %v977 = vperm.slane %v973, %v976
        %v978 = vsel %vm327, %v965, %v954
        %v980 = vunpack.c.l.s4 1983009808
        %v981 = vunpack.c.0.s8 %v980
        %v982 = vperm.slane %v978, %v981
        %v983 = vrot.slane %v966, 4
        %v984 = vsel %vm327, %v983, %v964
        %v986 = vunpack.c.l.s4 1983009808
        %v987 = vunpack.c.0.s8 %v986
        %v988 = vperm.slane %v984, %v987
        %v989 = vrot.slane %v977, 4
        %v990 = vsel %vm327, %v989, %v971
        %v991 = vrot.slane %v971, 4
        %v992 = vsel %vm327, %v977, %v991
        %v994 = vunpack.c.l.s4 1934713408
        %v995 = vunpack.c.0.s8 %v994
        %v996 = vperm.slane %v990, %v995
        %v998 = vunpack.c.l.s4 1934713408
        %v999 = vunpack.c.0.s8 %v998
        %v1000 = vperm.slane %v992, %v999
        %v1001 = vrot.slane %v988, 4
        %v1002 = vsel %vm327, %v1001, %v982
        %v1003 = vrot.slane %v982, 4
        %v1004 = vsel %vm327, %v988, %v1003
        %v1006 = vunpack.c.l.s4 1934713408
        %v1007 = vunpack.c.0.s8 %v1006
        %v1008 = vperm.slane %v1002, %v1007
        %v1010 = vunpack.c.l.s4 1934713408
        %v1011 = vunpack.c.0.s8 %v1010
        %v1012 = vperm.slane %v1004, %v1011
        %v1013 = vrot.slane %v1008, 4
        %v1014 = vsel %vm327, %v1013, %v996
        %v1015 = vrot.slane %v996, 4
        %v1016 = vsel %vm327, %v1008, %v1015
        %v1017 = vrot.slane %v1012, 4
        %v1018 = vsel %vm327, %v1017, %v1000
        %v1019 = vrot.slane %v1000, 4
        %v1020 = vsel %vm327, %v1012, %v1019
        %1022 = vrot.lane.b32.xlu0 %v1016, 8
        %v1023 = vpop.permute.xlu0 %1022
        %1026 = vrot.lane.b32.xlu0 %v1018, 16
        %v1027 = vpop.permute.xlu0 %1026
        %1030 = vrot.lane.b32.xlu0 %v1020, 24
        %v1031 = vpop.permute.xlu0 %1030
        %v1033 = vsel %vm700, %v1014, %v1023
        %vm1034 = vcmask 130048
        %v1035 = vsel %vm1034, %v1033, %v1027
        %vm1036 = vcmask 195584
        %v1037 = vsel %vm1036, %v1035, %v1031
        %v1038 = vpack.c.bf16 %v1037, %v1037
        %v1039 = vld [vmem:[#allocation7] sm:$0xf]
        %v1040 = vld [vmem:[#allocation7 + $0x4] sm:$0xf]
        %v1041 = vld [vmem:[#allocation7 + $0x8] sm:$0xf]
        %v1042 = vld [vmem:[#allocation7 + $0xc] sm:$0xf]
        %v1043 = vld [vmem:[%s4] sm:$0x1]
        %v1045 = vperm.slane %v1043, 0
        %v1051 = vunpack.c.l.b16 %v1039
        %v1052 = vunpack.c.l.b16 %v1040
        %v1053 = vunpack.c.l.b16 %v1041
        %v1054 = vunpack.c.l.b16 %v1042
        %v1055 = vpack.c.b16 %v1052, %v1051
        %v1056 = vpack.c.b16 %v1054, %v1053
        %v1060 = vsel %vm298, %v1038, 0
        %1062 = vmatpush.bf16.msra.mxu0 0
        %1063 = vmatpush.bf16.msra.mxu0 0
        %1064 = vmatpush.bf16.msra.mxu0 0
        %1065 = vmatpush.bf16.msra.mxu0 0
        %1066 = vmatpush.bf16.msra.mxu0 0
        %1067 = vmatpush.bf16.msra.mxu0 0
        %1068 = vmatpush.bf16.msra.mxu0 %v1056
        %1069 = vmatpush.bf16.msra.mxu0 %v1055
        %1070 = vmatmul.bf16.gmra.mxu0 %v1060
        %v1071 = vpop.f32.mrf.mxu0
        %v1072 = vadd.f32 %v1045, %v1071
        %v1073 = vpop.f32.mrf.mxu0
        %1074 = vdwg.mxu0
        %1075 = vst.msk [vmem:[%s274] sm:$0xff] %vm298, %v1072
        %s1076 = sand.u32 %s141, 1
        %s1077 = scalar_lea.sflag [#allocation4], %s1076
        %s1078 = sand.u32 %s141, 1
        %s1079 = smul.addr %s1078, 8
        %s1080 = scalar_lea.vmem [#allocation8], %s1079
        // Predicated region
        $region53: #{tpu_custom_call.1} parent=39 // pred_check
          %p1081 = pneg %p151
        $region54: #{tpu_custom_call.1} parent=39 // pred_check_branch
          %1083 = sbr.rel (%p1081) target = $region56
        $region55: #{tpu_custom_call.1} parent=39 // pred_region
          %1085 = vsyncadd %s1077, 0
          %s1086 = smul.addr %s23, 8
          %s1087 = scalar_lea.hbm %s5, %s1086
          %s1089 = sshll.u32 %s1080, 4
          %s1090 = int_to_ptr.vmem [resolvable:$true] %s1089
          %s1091 = sshll.u32 %s1087, 4
          %s1092 = int_to_ptr.hbm [resolvable:$true] %s1091
          %1094 = dma.vmem_to_hbm [thread:$0]  %s1090, 128, %s1092, %s1077
        $region56: #{tpu_custom_call.1} parent=39 // pred_fallthru
          _
      $region40: #{tpu_custom_call.1} parent=5 // pred_fallthru
        _
      %p1095 = scmp.le.s32.totalorder 2, %s18
      // Predicated region
      $region57: #{tpu_custom_call.1} parent=5 // pred_check
        %p1096 = pneg %p1095
      $region58: #{tpu_custom_call.1} parent=5 // pred_check_branch
        %1098 = sbr.rel (%p1096) target = $region60
      $region59: #{tpu_custom_call.1} parent=5 // pred_region
        %s1099 = ssub.s32 %s18, 2
        // Predicated region
        $region61: #{tpu_custom_call.1} parent=59 // pred_check
          %p1100 = pneg %p157
        $region62: #{tpu_custom_call.1} parent=59 // pred_check_branch
          %1102 = sbr.rel (%p1100) target = $region64
        $region63: #{tpu_custom_call.1} parent=59 // pred_region
          %s1103 = sand.u32 %s142, 1
          %s1104 = scalar_lea.sflag [#allocation4], %s1103
          %s1105 = sand.u32 %s142, 1
          %s1106 = smul.addr %s1105, 8
          %s1107 = scalar_lea.vmem [#allocation8], %s1106
          %1109 = dma.done %s1104, 128
        $region64: #{tpu_custom_call.1} parent=59 // pred_fallthru
          _
      $region60: #{tpu_custom_call.1} parent=5 // pred_fallthru
        _
    $region6: #{tpu_custom_call.1} parent=1 // loop_footer
      %s22 = sadd.s32 1, %s18
    $region7: #{tpu_custom_call.1} parent=1 // loop_footer_branch
      %17 = sbr.rel target = $region3
    $region8: #{tpu_custom_call.1} parent=1 // loop_exit
      _
    %1110 = vsyncpa [#allocation3], 1
    %s1111 = scalar_lea.sflag [#allocation3], 1
    %1112 = vsyncpa %s1111, 1
    %1113 = vsyncpa [#allocation6], 1
    %1114 = vsyncpa [#allocation4], 1
    %s1115 = scalar_lea.sflag [#allocation4], 1
    %1116 = vsyncpa %s1115, 1

</llo_original>
